<compile_context>
chip_gen: v6e
topology: v6e:2x2x1
jax: 0.10.0
libtpu: 0.0.40
codegen_flags: <defaults>
</compile_context>

<pallas_src>
import jax
import jax.numpy as jnp
from jax import lax
from jax.experimental import pallas as pl
from jax.experimental.pallas import tpu as pltpu


def _make_kernel(B, D, tb, td):
    need_row_mask = (B % tb) != 0
    need_col_mask = (D % td) != 0

    def kernel(tri_ref, p_ref, t_ref, cos_out_ref, sq_out_ref,
               carry_p_ref, carry_t_ref, dot_ref, pp_ref, tt_ref, sq_ref):
        i = pl.program_id(0)      # batch tile  ("parallel")
        kd = pl.program_id(1)     # feature chunk, innermost ("arbitrary")
        nd = pl.num_programs(1)

        # Per-batch-tile state, reset at the start of each D sweep.  No state
        # crosses batch tiles, so the i axis is safe to shard across cores.
        @pl.when(kd == 0)
        def _():
            carry_p_ref[...] = jnp.zeros_like(carry_p_ref)
            carry_t_ref[...] = jnp.zeros_like(carry_t_ref)
            dot_ref[...] = jnp.zeros_like(dot_ref)
            pp_ref[...] = jnp.zeros_like(pp_ref)
            tt_ref[...] = jnp.zeros_like(tt_ref)
            sq_ref[...] = jnp.zeros_like(sq_ref)

        def step(mask_cols):
            p = p_ref[...]
            t = t_ref[...]
            if mask_cols:
                # Ragged last chunk only: zero padded lanes of the inputs so
                # undefined pad data never reaches the MXU ...
                col_ids = kd * td + lax.broadcasted_iota(jnp.int32, (1, td), 1)
                col_ok = col_ids < D
                p = jnp.where(col_ok, p, 0.0)
                t = jnp.where(col_ok, t, 0.0)

            # Blocked prefix sum: in-chunk cumsum via the resident triangular
            # tile plus the carried running row-sum of all previous chunks.
            cp = jnp.dot(p, tri_ref[...], preferred_element_type=jnp.float32)
            ct = jnp.dot(t, tri_ref[...], preferred_element_type=jnp.float32)
            cp = cp + carry_p_ref[...]
            ct = ct + carry_t_ref[...]

            # tri = triu(ones) => last column of cp/ct is the new running
            # total: no extra cross-lane reduction needed.  For the ragged
            # last chunk this carry is never read again (reset at kd == 0).
            carry_p_ref[...] = cp[:, td - 1:td]
            carry_t_ref[...] = ct[:, td - 1:td]

            if mask_cols:
                # ... and zero padded columns of the cumsum before reducing
                # (they would otherwise repeat the last valid running total).
                cp = jnp.where(col_ok, cp, 0.0)
                ct = jnp.where(col_ok, ct, 0.0)

            # Per-row statistics, accumulated over the D chunks.  Raggedness
            # of the last batch tile is handled once at sweep end.
            dot_ref[...] = dot_ref[...] + jnp.sum(cp * ct, axis=-1, keepdims=True)
            pp_ref[...] = pp_ref[...] + jnp.sum(cp * cp, axis=-1, keepdims=True)
            tt_ref[...] = tt_ref[...] + jnp.sum(ct * ct, axis=-1, keepdims=True)
            diff = cp - ct
            sq_ref[...] = sq_ref[...] + jnp.sum(diff * diff, axis=-1,
                                                keepdims=True)

        if need_col_mask:
            # Only the last (ragged) feature chunk pays for iota/select work.
            last_chunk = kd == nd - 1

            @pl.when(last_chunk)
            def _():
                step(True)

            @pl.when(jnp.logical_not(last_chunk))
            def _():
                step(False)
        else:
            step(False)

        # End of the D sweep: emit this batch tile's partial sums (lane-dense
        # (1, 8, 128) block filled with the scalar; wrapper reads [:, 0, 0]).
        @pl.when(kd == nd - 1)
        def _():
            denom = jnp.maximum(jnp.sqrt(pp_ref[...] * tt_ref[...]),
                                jnp.float32(1e-6))
            abs_cos = jnp.abs(dot_ref[...]) / denom          # (tb, 1)
            sq_rows = sq_ref[...]                            # (tb, 1)
            if need_row_mask:
                # Depends only on i -> computed once per sweep.  jnp.where is
                # a select, so NaN/Inf in padded rows is discarded here.
                row_ids = i * tb + lax.broadcasted_iota(jnp.int32, (tb, 1), 0)
                row_ok = row_ids < B
                abs_cos = jnp.where(row_ok, abs_cos, 0.0)
                sq_rows = jnp.where(row_ok, sq_rows, 0.0)
            cos_out_ref[...] = jnp.zeros_like(cos_out_ref) + jnp.sum(abs_cos)
            sq_out_ref[...] = jnp.zeros_like(sq_out_ref) + jnp.sum(sq_rows)

    return kernel


def _default_td(D):
    """Feature-chunk width: 256 on v6e/v7x (256x256 MXU), 128 on v5e."""
    cap = 256
    try:
        kind = jax.devices()[0].device_kind.lower()
        if ("v5e" in kind) or ("v5 lite" in kind) or ("v5litepod" in kind):
            cap = 128
    except Exception:
        pass
    return D if D <= cap else cap


def prediction_loss_cos_mse(pred, target, *, tb=None, td=None):
    """Pallas wrapper. pred, target: (B, D) float32. Returns scalar f32 loss."""
    assert pred.shape == target.shape and pred.ndim == 2
    B, D = pred.shape

    if td is None:
        td = _default_td(D)
    td = min(td, D)
    if td < D:
        td = max(128, (td // 128) * 128)       # lane-dim blocks: multiple of 128

    if tb is None:
        tb = B if B <= 512 else 512            # big tiles amortize step overhead
    tb = min(tb, B)
    if tb < B:
        tb = max(8, (tb // 8) * 8)             # sublane-dim blocks: multiple of 8

    nb = pl.cdiv(B, tb)
    nd = pl.cdiv(D, td)

    # Upper-triangular ones matrix for the in-chunk prefix sum; built once on
    # the host, VMEM-resident in the kernel (constant block index -> no re-DMA).
    tri = jnp.triu(jnp.ones((td, td), dtype=jnp.float32))

    kernel = _make_kernel(B, D, tb, td)

    cost = pl.CostEstimate(
        flops=4 * B * D * td + 12 * B * D,
        transcendentals=B,
        bytes_accessed=4 * (2 * B * D + td * td + 2 * nb * 8 * 128),
    )

    cos_part, sq_part = pl.pallas_call(
        kernel,
        out_shape=(
            jax.ShapeDtypeStruct((nb, 8, 128), jnp.float32),  # per-tile sum|cos|
            jax.ShapeDtypeStruct((nb, 8, 128), jnp.float32),  # per-tile sum diff^2
        ),
        grid=(nb, nd),
        in_specs=[
            pl.BlockSpec((td, td), lambda i, k: (0, 0)),   # tri (VMEM resident)
            pl.BlockSpec((tb, td), lambda i, k: (i, k)),   # pred tile
            pl.BlockSpec((tb, td), lambda i, k: (i, k)),   # target tile
        ],
        out_specs=(
            pl.BlockSpec((1, 8, 128), lambda i, k: (i, 0, 0)),
            pl.BlockSpec((1, 8, 128), lambda i, k: (i, 0, 0)),
        ),
        scratch_shapes=[
            pltpu.VMEM((tb, 1), jnp.float32),   # carry: pred running row sums
            pltpu.VMEM((tb, 1), jnp.float32),   # carry: target running row sums
            pltpu.VMEM((tb, 1), jnp.float32),   # sum cp*ct per row
            pltpu.VMEM((tb, 1), jnp.float32),   # sum cp^2 per row
            pltpu.VMEM((tb, 1), jnp.float32),   # sum ct^2 per row
            pltpu.VMEM((tb, 1), jnp.float32),   # sum (cp-ct)^2 per row
        ],
        compiler_params=pltpu.CompilerParams(
            # Batch tiles are fully independent (per-tile partial outputs),
            # feature chunks carry the cumsum state -> keep kd innermost.
            dimension_semantics=("parallel", "arbitrary"),
        ),
        cost_estimate=cost,
    )(tri, pred, target)

    # Final reduction over batch-tile partials (cheap, done in XLA).
    cos_sim = jnp.sum(cos_part[:, 0, 0]) / jnp.float32(B)
    mse = jnp.sum(sq_part[:, 0, 0]) / jnp.float32(B * D)
    return (5.0 * mse) / (15.0 * cos_sim)


def _reference(pred, target):
    """Pure-JAX reference mirroring the PyTorch module."""
    cp = jnp.cumsum(pred, axis=-1)
    ct = jnp.cumsum(target, axis=-1)
    dot = jnp.sum(cp * ct, axis=1)
    denom = jnp.maximum(
        jnp.linalg.norm(cp, axis=1) * jnp.linalg.norm(ct, axis=1), 1e-6
    )
    cos_sim = jnp.mean(jnp.abs(dot / denom))
    mse = jnp.mean((cp - ct) ** 2)
    return 5.0 * mse / (15.0 * cos_sim)


if __name__ == "__main__":
    key = jax.random.PRNGKey(0)
    k1, k2, k3, k4 = jax.random.split(key, 4)

    # Case 1: small, aligned shapes (single grid step).
    B, D = 8, 128
    pred = jax.random.normal(k1, (B, D), dtype=jnp.float32)
    target = jax.random.normal(k2, (B, D), dtype=jnp.float32)
    loss = jax.block_until_ready(prediction_loss_cos_mse(pred, target))
    ref = jax.block_until_ready(_reference(pred, target))
    assert jnp.allclose(loss, ref, rtol=1e-4, atol=1e-5), (loss, ref)

    # Case 2: ragged shapes exercising batch/feature tiling, carry, masks and
    # the per-batch-tile partial outputs.
    B2, D2 = 20, 320
    pred2 = jax.random.normal(k3, (B2, D2), dtype=jnp.float32)
    target2 = jax.random.normal(k4, (B2, D2), dtype=jnp.float32)
    loss2 = jax.block_until_ready(
        prediction_loss_cos_mse(pred2, target2, tb=8, td=128))
    ref2 = jax.block_until_ready(_reference(pred2, target2))
    assert jnp.allclose(loss2, ref2, rtol=1e-4, atol=1e-5), (loss2, ref2)

    print("KERNEL_OK")
</pallas_src>

<mosaic_0001>
module attributes {stable_mosaic.version = 11 : i64} {
  func.func @kernel(%arg0: i32, %arg1: i32, %arg2: memref<128x128xf32, #tpu.memory_space<vmem>>, %arg3: memref<8x128xf32, #tpu.memory_space<vmem>>, %arg4: memref<8x128xf32, #tpu.memory_space<vmem>>, %arg5: memref<1x8x128xf32, #tpu.memory_space<vmem>>, %arg6: memref<1x8x128xf32, #tpu.memory_space<vmem>>, %arg7: memref<8x1xf32, #tpu.memory_space<vmem>>, %arg8: memref<8x1xf32, #tpu.memory_space<vmem>>, %arg9: memref<8x1xf32, #tpu.memory_space<vmem>>, %arg10: memref<8x1xf32, #tpu.memory_space<vmem>>, %arg11: memref<8x1xf32, #tpu.memory_space<vmem>>, %arg12: memref<8x1xf32, #tpu.memory_space<vmem>>) attributes {dimension_semantics = [#tpu.dimension_semantics<parallel>, #tpu.dimension_semantics<arbitrary>], iteration_bounds = array<i64: 1, 1>, scalar_prefetch = 0 : i64, scratch_operands = 6 : i64, tpu.core_type = #tpu.core_type<tc>, window_params = [{pipeline_mode = #tpu.pipeline_mode<synchronous>, transform_indices = @transform_0, window_bounds = array<i64: 128, 128>}, {transform_indices = @transform_1, window_bounds = array<i64: 8, 128>}, {transform_indices = @transform_2, window_bounds = array<i64: 8, 128>}, {transform_indices = @transform_3, window_bounds = array<i64: 1, 8, 128>}, {transform_indices = @transform_4, window_bounds = array<i64: 1, 8, 128>}]} {
    %c0_i32 = arith.constant 0 : i32
    %0 = arith.cmpi eq, %arg1, %c0_i32 : i32
    %1 = arith.extui %0 : i1 to i32
    %c0_i32_0 = arith.constant 0 : i32
    %2 = arith.cmpi ne, %1, %c0_i32_0 : i32
    scf.if %2 {
      %cst_39 = arith.constant 0.000000e+00 : f32
      %47 = vector.broadcast %cst_39 : f32 to vector<8x1xf32>
      %c0_40 = arith.constant 0 : index
      %c0_41 = arith.constant 0 : index
      %48 = vector.load %arg7[%c0_40, %c0_41] : memref<8x1xf32, #tpu.memory_space<vmem>>, vector<8x1xf32>
      tpu.vector_store %arg7[%c0_40, %c0_41], %47 {strides = array<i32>} : memref<8x1xf32, #tpu.memory_space<vmem>>, vector<8x1xf32>,
      %cst_42 = arith.constant 0.000000e+00 : f32
      %49 = vector.broadcast %cst_42 : f32 to vector<8x1xf32>
      %c0_43 = arith.constant 0 : index
      %c0_44 = arith.constant 0 : index
      %50 = vector.load %arg8[%c0_43, %c0_44] : memref<8x1xf32, #tpu.memory_space<vmem>>, vector<8x1xf32>
      tpu.vector_store %arg8[%c0_43, %c0_44], %49 {strides = array<i32>} : memref<8x1xf32, #tpu.memory_space<vmem>>, vector<8x1xf32>,
      %cst_45 = arith.constant 0.000000e+00 : f32
      %51 = vector.broadcast %cst_45 : f32 to vector<8x1xf32>
      %c0_46 = arith.constant 0 : index
      %c0_47 = arith.constant 0 : index
      %52 = vector.load %arg9[%c0_46, %c0_47] : memref<8x1xf32, #tpu.memory_space<vmem>>, vector<8x1xf32>
      tpu.vector_store %arg9[%c0_46, %c0_47], %51 {strides = array<i32>} : memref<8x1xf32, #tpu.memory_space<vmem>>, vector<8x1xf32>,
      %cst_48 = arith.constant 0.000000e+00 : f32
      %53 = vector.broadcast %cst_48 : f32 to vector<8x1xf32>
      %c0_49 = arith.constant 0 : index
      %c0_50 = arith.constant 0 : index
      %54 = vector.load %arg10[%c0_49, %c0_50] : memref<8x1xf32, #tpu.memory_space<vmem>>, vector<8x1xf32>
      tpu.vector_store %arg10[%c0_49, %c0_50], %53 {strides = array<i32>} : memref<8x1xf32, #tpu.memory_space<vmem>>, vector<8x1xf32>,
      %cst_51 = arith.constant 0.000000e+00 : f32
      %55 = vector.broadcast %cst_51 : f32 to vector<8x1xf32>
      %c0_52 = arith.constant 0 : index
      %c0_53 = arith.constant 0 : index
      %56 = vector.load %arg11[%c0_52, %c0_53] : memref<8x1xf32, #tpu.memory_space<vmem>>, vector<8x1xf32>
      tpu.vector_store %arg11[%c0_52, %c0_53], %55 {strides = array<i32>} : memref<8x1xf32, #tpu.memory_space<vmem>>, vector<8x1xf32>,
      %cst_54 = arith.constant 0.000000e+00 : f32
      %57 = vector.broadcast %cst_54 : f32 to vector<8x1xf32>
      %c0_55 = arith.constant 0 : index
      %c0_56 = arith.constant 0 : index
      %58 = vector.load %arg12[%c0_55, %c0_56] : memref<8x1xf32, #tpu.memory_space<vmem>>, vector<8x1xf32>
      tpu.vector_store %arg12[%c0_55, %c0_56], %57 {strides = array<i32>} : memref<8x1xf32, #tpu.memory_space<vmem>>, vector<8x1xf32>,
    } else {
    }
    %c0 = arith.constant 0 : index
    %c0_1 = arith.constant 0 : index
    %3 = vector.load %arg3[%c0, %c0_1] : memref<8x128xf32, #tpu.memory_space<vmem>>, vector<8x128xf32>
    %c0_2 = arith.constant 0 : index
    %c0_3 = arith.constant 0 : index
    %4 = vector.load %arg4[%c0_2, %c0_3] : memref<8x128xf32, #tpu.memory_space<vmem>>, vector<8x128xf32>
    %c0_4 = arith.constant 0 : index
    %c0_5 = arith.constant 0 : index
    %5 = vector.load %arg2[%c0_4, %c0_5] : memref<128x128xf32, #tpu.memory_space<vmem>>, vector<128x128xf32>
    %cst = arith.constant dense<0.000000e+00> : vector<8x128xf32>
    %6 = tpu.matmul %3, %5, %cst {dimension_numbers = #tpu.dot_dimension_numbers<[1], [0], [0], [1], [0, 0, 1, 1], [], []>} : vector<8x128xf32>, vector<128x128xf32>, vector<8x128xf32> -> vector<8x128xf32>
    %c0_6 = arith.constant 0 : index
    %c0_7 = arith.constant 0 : index
    %7 = vector.load %arg2[%c0_6, %c0_7] : memref<128x128xf32, #tpu.memory_space<vmem>>, vector<128x128xf32>
    %cst_8 = arith.constant dense<0.000000e+00> : vector<8x128xf32>
    %8 = tpu.matmul %4, %7, %cst_8 {dimension_numbers = #tpu.dot_dimension_numbers<[1], [0], [0], [1], [0, 0, 1, 1], [], []>} : vector<8x128xf32>, vector<128x128xf32>, vector<8x128xf32> -> vector<8x128xf32>
    %c0_9 = arith.constant 0 : index
    %c0_10 = arith.constant 0 : index
    %9 = vector.load %arg7[%c0_9, %c0_10] : memref<8x1xf32, #tpu.memory_space<vmem>>, vector<8x1xf32>
    %10 = vector.broadcast %9 : vector<8x1xf32> to vector<8x128xf32>
    %11 = arith.addf %6, %10 : vector<8x128xf32>
    %c0_11 = arith.constant 0 : index
    %c0_12 = arith.constant 0 : index
    %12 = vector.load %arg8[%c0_11, %c0_12] : memref<8x1xf32, #tpu.memory_space<vmem>>, vector<8x1xf32>
    %13 = vector.broadcast %12 : vector<8x1xf32> to vector<8x128xf32>
    %14 = arith.addf %8, %13 : vector<8x128xf32>
    %15 = vector.extract_strided_slice %11 {offsets = [0, 127], sizes = [8, 1], strides = [1, 1]} : vector<8x128xf32> to vector<8x1xf32>
    %c0_13 = arith.constant 0 : index
    %c0_14 = arith.constant 0 : index
    %16 = vector.load %arg7[%c0_13, %c0_14] : memref<8x1xf32, #tpu.memory_space<vmem>>, vector<8x1xf32>
    tpu.vector_store %arg7[%c0_13, %c0_14], %15 {strides = array<i32>} : memref<8x1xf32, #tpu.memory_space<vmem>>, vector<8x1xf32>,
    %17 = vector.extract_strided_slice %14 {offsets = [0, 127], sizes = [8, 1], strides = [1, 1]} : vector<8x128xf32> to vector<8x1xf32>
    %c0_15 = arith.constant 0 : index
    %c0_16 = arith.constant 0 : index
    %18 = vector.load %arg8[%c0_15, %c0_16] : memref<8x1xf32, #tpu.memory_space<vmem>>, vector<8x1xf32>
    tpu.vector_store %arg8[%c0_15, %c0_16], %17 {strides = array<i32>} : memref<8x1xf32, #tpu.memory_space<vmem>>, vector<8x1xf32>,
    %c0_17 = arith.constant 0 : index
    %c0_18 = arith.constant 0 : index
    %19 = vector.load %arg9[%c0_17, %c0_18] : memref<8x1xf32, #tpu.memory_space<vmem>>, vector<8x1xf32>
    %20 = arith.mulf %11, %14 : vector<8x128xf32>
    %cst_19 = arith.constant dense<0.000000e+00> : vector<8xf32>
    %21 = vector.multi_reduction <add>, %20, %cst_19 [1] : vector<8x128xf32> to vector<8xf32>
    %22 = vector.shape_cast %21 : vector<8xf32> to vector<8x1xf32>
    %23 = arith.addf %19, %22 : vector<8x1xf32>
    %c0_20 = arith.constant 0 : index
    %c0_21 = arith.constant 0 : index
    %24 = vector.load %arg9[%c0_20, %c0_21] : memref<8x1xf32, #tpu.memory_space<vmem>>, vector<8x1xf32>
    tpu.vector_store %arg9[%c0_20, %c0_21], %23 {strides = array<i32>} : memref<8x1xf32, #tpu.memory_space<vmem>>, vector<8x1xf32>,
    %c0_22 = arith.constant 0 : index
    %c0_23 = arith.constant 0 : index
    %25 = vector.load %arg10[%c0_22, %c0_23] : memref<8x1xf32, #tpu.memory_space<vmem>>, vector<8x1xf32>
    %26 = arith.mulf %11, %11 : vector<8x128xf32>
    %cst_24 = arith.constant dense<0.000000e+00> : vector<8xf32>
    %27 = vector.multi_reduction <add>, %26, %cst_24 [1] : vector<8x128xf32> to vector<8xf32>
    %28 = vector.shape_cast %27 : vector<8xf32> to vector<8x1xf32>
    %29 = arith.addf %25, %28 : vector<8x1xf32>
    %c0_25 = arith.constant 0 : index
    %c0_26 = arith.constant 0 : index
    %30 = vector.load %arg10[%c0_25, %c0_26] : memref<8x1xf32, #tpu.memory_space<vmem>>, vector<8x1xf32>
    tpu.vector_store %arg10[%c0_25, %c0_26], %29 {strides = array<i32>} : memref<8x1xf32, #tpu.memory_space<vmem>>, vector<8x1xf32>,
    %c0_27 = arith.constant 0 : index
    %c0_28 = arith.constant 0 : index
    %31 = vector.load %arg11[%c0_27, %c0_28] : memref<8x1xf32, #tpu.memory_space<vmem>>, vector<8x1xf32>
    %32 = arith.mulf %14, %14 : vector<8x128xf32>
    %cst_29 = arith.constant dense<0.000000e+00> : vector<8xf32>
    %33 = vector.multi_reduction <add>, %32, %cst_29 [1] : vector<8x128xf32> to vector<8xf32>
    %34 = vector.shape_cast %33 : vector<8xf32> to vector<8x1xf32>
    %35 = arith.addf %31, %34 : vector<8x1xf32>
    %c0_30 = arith.constant 0 : index
    %c0_31 = arith.constant 0 : index
    %36 = vector.load %arg11[%c0_30, %c0_31] : memref<8x1xf32, #tpu.memory_space<vmem>>, vector<8x1xf32>
    tpu.vector_store %arg11[%c0_30, %c0_31], %35 {strides = array<i32>} : memref<8x1xf32, #tpu.memory_space<vmem>>, vector<8x1xf32>,
    %37 = arith.subf %11, %14 : vector<8x128xf32>
    %c0_32 = arith.constant 0 : index
    %c0_33 = arith.constant 0 : index
    %38 = vector.load %arg12[%c0_32, %c0_33] : memref<8x1xf32, #tpu.memory_space<vmem>>, vector<8x1xf32>
    %39 = arith.mulf %37, %37 : vector<8x128xf32>
    %cst_34 = arith.constant dense<0.000000e+00> : vector<8xf32>
    %40 = vector.multi_reduction <add>, %39, %cst_34 [1] : vector<8x128xf32> to vector<8xf32>
    %41 = vector.shape_cast %40 : vector<8xf32> to vector<8x1xf32>
    %42 = arith.addf %38, %41 : vector<8x1xf32>
    %c0_35 = arith.constant 0 : index
    %c0_36 = arith.constant 0 : index
    %43 = vector.load %arg12[%c0_35, %c0_36] : memref<8x1xf32, #tpu.memory_space<vmem>>, vector<8x1xf32>
    tpu.vector_store %arg12[%c0_35, %c0_36], %42 {strides = array<i32>} : memref<8x1xf32, #tpu.memory_space<vmem>>, vector<8x1xf32>,
    %c0_i32_37 = arith.constant 0 : i32
    %44 = arith.cmpi eq, %arg1, %c0_i32_37 : i32
    %45 = arith.extui %44 : i1 to i32
    %c0_i32_38 = arith.constant 0 : i32
    %46 = arith.cmpi ne, %45, %c0_i32_38 : i32
    scf.if %46 {
      %c0_39 = arith.constant 0 : index
      %c0_40 = arith.constant 0 : index
      %47 = vector.load %arg10[%c0_39, %c0_40] : memref<8x1xf32, #tpu.memory_space<vmem>>, vector<8x1xf32>
      %c0_41 = arith.constant 0 : index
      %c0_42 = arith.constant 0 : index
      %48 = vector.load %arg11[%c0_41, %c0_42] : memref<8x1xf32, #tpu.memory_space<vmem>>, vector<8x1xf32>
      %49 = arith.mulf %47, %48 : vector<8x1xf32>
      %50 = math.sqrt %49 : vector<8x1xf32>
      %cst_43 = arith.constant 9.99999997E-7 : f32
      %51 = vector.broadcast %cst_43 : f32 to vector<8x1xf32>
      %52 = arith.maximumf %50, %51 : vector<8x1xf32>
      %c0_44 = arith.constant 0 : index
      %c0_45 = arith.constant 0 : index
      %53 = vector.load %arg9[%c0_44, %c0_45] : memref<8x1xf32, #tpu.memory_space<vmem>>, vector<8x1xf32>
      %54 = math.absf %53 : vector<8x1xf32>
      %55 = arith.divf %54, %52 : vector<8x1xf32>
      %c0_46 = arith.constant 0 : index
      %c0_47 = arith.constant 0 : index
      %56 = vector.load %arg12[%c0_46, %c0_47] : memref<8x1xf32, #tpu.memory_space<vmem>>, vector<8x1xf32>
      %cst_48 = arith.constant 0.000000e+00 : f32
      %57 = vector.broadcast %cst_48 : f32 to vector<1x8x128xf32>
      %58 = vector.shape_cast %55 : vector<8x1xf32> to vector<1x8x1xf32>
      %cst_49 = arith.constant dense<0.000000e+00> : vector<1xf32>
      %59 = vector.multi_reduction <add>, %58, %cst_49 [1, 2] : vector<1x8x1xf32> to vector<1xf32>
      %60 = vector.shape_cast %59 : vector<1xf32> to vector<1x1x1xf32>
      %61 = vector.extract %60[0, 0, 0] : f32 from vector<1x1x1xf32>
      %62 = vector.broadcast %61 : f32 to vector<1x8x128xf32>
      %63 = arith.addf %57, %62 : vector<1x8x128xf32>
      %c0_50 = arith.constant 0 : index
      %c0_51 = arith.constant 0 : index
      %c0_52 = arith.constant 0 : index
      %64 = vector.load %arg5[%c0_50, %c0_51, %c0_52] : memref<1x8x128xf32, #tpu.memory_space<vmem>>, vector<1x8x128xf32>
      tpu.vector_store %arg5[%c0_50, %c0_51, %c0_52], %63 {strides = array<i32>} : memref<1x8x128xf32, #tpu.memory_space<vmem>>, vector<1x8x128xf32>,
      %cst_53 = arith.constant 0.000000e+00 : f32
      %65 = vector.broadcast %cst_53 : f32 to vector<1x8x128xf32>
      %66 = vector.shape_cast %56 : vector<8x1xf32> to vector<1x8x1xf32>
      %cst_54 = arith.constant dense<0.000000e+00> : vector<1xf32>
      %67 = vector.multi_reduction <add>, %66, %cst_54 [1, 2] : vector<1x8x1xf32> to vector<1xf32>
      %68 = vector.shape_cast %67 : vector<1xf32> to vector<1x1x1xf32>
      %69 = vector.extract %68[0, 0, 0] : f32 from vector<1x1x1xf32>
      %70 = vector.broadcast %69 : f32 to vector<1x8x128xf32>
      %71 = arith.addf %65, %70 : vector<1x8x128xf32>
      %c0_55 = arith.constant 0 : index
      %c0_56 = arith.constant 0 : index
      %c0_57 = arith.constant 0 : index
      %72 = vector.load %arg6[%c0_55, %c0_56, %c0_57] : memref<1x8x128xf32, #tpu.memory_space<vmem>>, vector<1x8x128xf32>
      tpu.vector_store %arg6[%c0_55, %c0_56, %c0_57], %71 {strides = array<i32>} : memref<1x8x128xf32, #tpu.memory_space<vmem>>, vector<1x8x128xf32>,
    } else {
    }
    return
  }
  func.func @transform_0(%arg0: i32, %arg1: i32) -> (i32, i32) {
    %c0_i32 = arith.constant 0 : i32
    %c0_i32_0 = arith.constant 0 : i32
    %c0_i32_1 = arith.constant 0 : i32
    return %c0_i32, %c0_i32_0 : i32, i32
  }
  func.func @transform_1(%arg0: i32, %arg1: i32) -> (i32, i32) {
    %c0_i32 = arith.constant 0 : i32
    return %arg0, %arg1 : i32, i32
  }
  func.func @transform_2(%arg0: i32, %arg1: i32) -> (i32, i32) {
    %c0_i32 = arith.constant 0 : i32
    return %arg0, %arg1 : i32, i32
  }
  func.func @transform_3(%arg0: i32, %arg1: i32) -> (i32, i32, i32) {
    %c0_i32 = arith.constant 0 : i32
    %c0_i32_0 = arith.constant 0 : i32
    %c0_i32_1 = arith.constant 0 : i32
    return %arg0, %c0_i32, %c0_i32_0 : i32, i32, i32
  }
  func.func @transform_4(%arg0: i32, %arg1: i32) -> (i32, i32, i32) {
    %c0_i32 = arith.constant 0 : i32
    %c0_i32_0 = arith.constant 0 : i32
    %c0_i32_1 = arith.constant 0 : i32
    return %arg0, %c0_i32, %c0_i32_0 : i32, i32, i32
  }
}

</mosaic_0001>

<llo_original>
// kernel: tpu_custom_call.1
$region0: #{tpu_custom_call.1}
  #allocation0 [shape = 'u32[]', space=smem, size = 0x4, offset = 0x4, fixed_abs, tag = 'smem constant byte address 0x4 - core index']
  #allocation1 [shape = 'u32[144,128]{1,0:T(1,128)}', space=vmem, size = 0x12000, scoped, tag = 'internal scratch']
  #allocation2 [shape = 'f32[8,1]{1,0:T(8,128)}', space=vmem, size = 0x1000, scoped, tag = 'scratch operand']
  #allocation3 [shape = 'f32[8,1]{1,0:T(8,128)}', space=vmem, size = 0x1000, scoped, tag = 'scratch operand']
  #allocation4 [shape = 'f32[8,1]{1,0:T(8,128)}', space=vmem, size = 0x1000, scoped, tag = 'scratch operand']
  #allocation5 [shape = 'f32[8,1]{1,0:T(8,128)}', space=vmem, size = 0x1000, scoped, tag = 'scratch operand']
  #allocation6 [shape = 'f32[8,1]{1,0:T(8,128)}', space=vmem, size = 0x1000, scoped, tag = 'scratch operand']
  #allocation7 [shape = 'f32[8,1]{1,0:T(8,128)}', space=vmem, size = 0x1000, scoped, tag = 'scratch operand']
  %s0 = inlined_call_operand.hbm [shape: f32[128,128], index: 0, kind: input, shape index: {}]
  %s1 = inlined_call_operand.hbm [shape: f32[8,128], index: 1, kind: input, shape index: {}]
  %s2 = inlined_call_operand.hbm [shape: f32[8,128], index: 2, kind: input, shape index: {}]
  %s3 = inlined_call_operand.hbm [shape: f32[1,8,128], index: 3, kind: output, shape index: {0}]
  %s4 = inlined_call_operand.hbm [shape: f32[1,8,128], index: 4, kind: output, shape index: {1}]
  %5 = xla_tuple %s3, %s4
  %s6 = sld [smem:[#allocation0]]
  $region50: #{tpu_custom_call.1} parent=0
    _
  %s8 = ssub.s32 1, %s6
  %s9 = scalar_select 0, %s8, %s6
  $region1: #{tpu_custom_call.1} parent=0
    #allocation8 [shape = 'u8[65536]{0}', space=vmem, size = 0x10000, scoped, tag = 'input window, operand 0, single buffered']
    #allocation9 [shape = 's32[1]{0}', space=sflag, size = 0x4, scoped, tag = 'scoped memory for tpu_custom_call.1']
    #allocation10 [shape = 's32[1]{0}', space=sflag, size = 0x4, scoped, tag = 'scoped memory for tpu_custom_call.1']
    #allocation11 [shape = 'u8[4096]{0}', space=vmem, size = 0x1000, scoped, tag = 'input window, operand 1, single buffered']
    #allocation12 [shape = 's32[1]{0}', space=sflag, size = 0x4, scoped, tag = 'scoped memory for tpu_custom_call.1']
    #allocation13 [shape = 'u8[4096]{0}', space=vmem, size = 0x1000, scoped, tag = 'input window, operand 2, single buffered']
    #allocation14 [shape = 'u8[4096]{0}', space=vmem, size = 0x1000, scoped, tag = 'output window, operand 0, single buffered']
    #allocation15 [shape = 'u8[4096]{0}', space=vmem, size = 0x1000, scoped, tag = 'output window, operand 1, single buffered']
    #allocation16 [shape = 's32[1]{0}', space=sflag, size = 0x4, scoped, tag = 'scoped memory for tpu_custom_call.1']
    %10 = vsyncpa [#allocation9], 0
    %11 = vsyncpa [#allocation12], 0
    %12 = vsyncpa [#allocation10], 0
    %13 = vsyncpa [#allocation16], 0
    // Predicated region
    $region2: #{tpu_custom_call.1} parent=1 // pred_check
      _
    $region3: #{tpu_custom_call.1} parent=1 // pred_check_branch
      %15 = sbr.rel (0) target = $region5
    $region4: #{tpu_custom_call.1} parent=1 // pred_region
      %s17 = ssub.s32 2048, 2048
      %18 = vsyncadd [#allocation9], %s17
      %s19 = sshll.u32 [#allocation8], 4
      %s20 = int_to_ptr.vmem [resolvable:$true] %s19
      %25 = dma.hbm_to_vmem [thread:$0]  %s0, 2048, %s20, [#allocation9], 128, 128, 8
    $region5: #{tpu_custom_call.1} parent=1 // pred_fallthru
      _
    // Predicated region
    $region6: #{tpu_custom_call.1} parent=1 // pred_check
      _
    $region7: #{tpu_custom_call.1} parent=1 // pred_check_branch
      %27 = sbr.rel (0) target = $region9
    $region8: #{tpu_custom_call.1} parent=1 // pred_region
      %s29 = ssub.s32 128, 128
      %30 = vsyncadd [#allocation12], %s29
      %s32 = sshll.u32 [#allocation11], 4
      %s33 = int_to_ptr.vmem [resolvable:$true] %s32
      %35 = dma.hbm_to_vmem [thread:$0]  %s1, 128, %s33, [#allocation12]
    $region9: #{tpu_custom_call.1} parent=1 // pred_fallthru
      _
    // Predicated region
    $region10: #{tpu_custom_call.1} parent=1 // pred_check
      _
    $region11: #{tpu_custom_call.1} parent=1 // pred_check_branch
      %37 = sbr.rel (0) target = $region13
    $region12: #{tpu_custom_call.1} parent=1 // pred_region
      %s39 = ssub.s32 128, 128
      %40 = vsyncadd [#allocation12], %s39
      %s42 = sshll.u32 [#allocation13], 4
      %s43 = int_to_ptr.vmem [resolvable:$true] %s42
      %45 = dma.hbm_to_vmem [thread:$0]  %s2, 128, %s43, [#allocation12]
    $region13: #{tpu_custom_call.1} parent=1 // pred_fallthru
      _
    // Predicated region
    $region14: #{tpu_custom_call.1} parent=1 // pred_check
      _
    $region15: #{tpu_custom_call.1} parent=1 // pred_check_branch
      %47 = sbr.rel (0) target = $region17
    $region16: #{tpu_custom_call.1} parent=1 // pred_region
      %48 = dma.done [#allocation9], 2048
    $region17: #{tpu_custom_call.1} parent=1 // pred_fallthru
      _
    // Predicated region
    $region18: #{tpu_custom_call.1} parent=1 // pred_check
      _
    $region19: #{tpu_custom_call.1} parent=1 // pred_check_branch
      %50 = sbr.rel (0) target = $region21
    $region20: #{tpu_custom_call.1} parent=1 // pred_region
      %51 = dma.done [#allocation12], 128
    $region21: #{tpu_custom_call.1} parent=1 // pred_fallthru
      _
    // Predicated region
    $region22: #{tpu_custom_call.1} parent=1 // pred_check
      _
    $region23: #{tpu_custom_call.1} parent=1 // pred_check_branch
      %53 = sbr.rel (0) target = $region25
    $region24: #{tpu_custom_call.1} parent=1 // pred_region
      %54 = dma.done [#allocation12], 128
    $region25: #{tpu_custom_call.1} parent=1 // pred_fallthru
      _
    %p55 = scmp.eq.s32.totalorder 0, 0
    // Predicated region
    $region26: #{tpu_custom_call.1} parent=1 // pred_check
      %p56 = pneg %p55
    $region27: #{tpu_custom_call.1} parent=1 // pred_check_branch
      %58 = sbr.rel (%p56) target = $region29
    $region28: #{tpu_custom_call.1} parent=1 // pred_region
      %vm59 = vcmask 7168
      %60 = vst.msk [vmem:[#allocation2] sm:$0xff] %vm59, 0.0
      %61 = vst.msk [vmem:[#allocation3] sm:$0xff] %vm59, 0.0
      %62 = vst.msk [vmem:[#allocation4] sm:$0xff] %vm59, 0.0
      %63 = vst.msk [vmem:[#allocation5] sm:$0xff] %vm59, 0.0
      %64 = vst.msk [vmem:[#allocation6] sm:$0xff] %vm59, 0.0
      %65 = vst.msk [vmem:[#allocation7] sm:$0xff] %vm59, 0.0
    $region29: #{tpu_custom_call.1} parent=1 // pred_fallthru
      _
    %v66 = vld [vmem:[#allocation11] sm:$0xff]
    %v67 = vld [vmem:[#allocation13] sm:$0xff]
    %v68 = vld [vmem:[#allocation8] sm:$0xff]
    %v69 = vld [vmem:[#allocation8 + $0x8] sm:$0xff]
    %v70 = vld [vmem:[#allocation8 + $0x10] sm:$0xff]
    %v71 = vld [vmem:[#allocation8 + $0x18] sm:$0xff]
    %v72 = vld [vmem:[#allocation8 + $0x20] sm:$0xff]
    %v73 = vld [vmem:[#allocation8 + $0x28] sm:$0xff]
    %v74 = vld [vmem:[#allocation8 + $0x30] sm:$0xff]
    %v75 = vld [vmem:[#allocation8 + $0x38] sm:$0xff]
    %v76 = vld [vmem:[#allocation8 + $0x40] sm:$0xff]
    %v77 = vld [vmem:[#allocation8 + $0x48] sm:$0xff]
    %v78 = vld [vmem:[#allocation8 + $0x50] sm:$0xff]
    %v79 = vld [vmem:[#allocation8 + $0x58] sm:$0xff]
    %v80 = vld [vmem:[#allocation8 + $0x60] sm:$0xff]
    %v81 = vld [vmem:[#allocation8 + $0x68] sm:$0xff]
    %v82 = vld [vmem:[#allocation8 + $0x70] sm:$0xff]
    %v83 = vld [vmem:[#allocation8 + $0x78] sm:$0xff]
    %v84 = vld [vmem:[#allocation2] sm:$0xff]
    %86 = vset.pattern.permute.xlu0 0
    %87 = vperm.xlu0 %86, %v84
    %v88 = vpop.permute.xlu0 %87
    %90 = vmatprep.subr.mxu0 0.0
    %91 = vmatpush1.msra.mxu0 %v83
    %92 = vmatprep.subr.mxu0 0.0
    %93 = vmatpush1.msra.mxu0 %v82
    %94 = vmatprep.subr.mxu0 0.0
    %95 = vmatpush1.msra.mxu0 %v81
    %96 = vmatprep.subr.mxu0 0.0
    %97 = vmatpush1.msra.mxu0 %v80
    %98 = vmatprep.subr.mxu0 0.0
    %99 = vmatpush1.msra.mxu0 %v79
    %100 = vmatprep.subr.mxu0 0.0
    %101 = vmatpush1.msra.mxu0 %v78
    %102 = vmatprep.subr.mxu0 0.0
    %103 = vmatpush1.msra.mxu0 %v77
    %104 = vmatprep.subr.mxu0 0.0
    %105 = vmatpush1.msra.mxu0 %v76
    %106 = vmatprep.subr.mxu0 0.0
    %107 = vmatpush1.msra.mxu0 %v75
    %108 = vmatprep.subr.mxu0 0.0
    %109 = vmatpush1.msra.mxu0 %v74
    %110 = vmatprep.subr.mxu0 0.0
    %111 = vmatpush1.msra.mxu0 %v73
    %112 = vmatprep.subr.mxu0 0.0
    %113 = vmatpush1.msra.mxu0 %v72
    %114 = vmatprep.subr.mxu0 0.0
    %115 = vmatpush1.msra.mxu0 %v71
    %116 = vmatprep.subr.mxu0 0.0
    %117 = vmatpush1.msra.mxu0 %v70
    %118 = vmatprep.subr.mxu0 0.0
    %119 = vmatpush1.msra.mxu0 %v69
    %120 = vmatprep.subr.mxu0 0.0
    %121 = vmatpush1.msra.mxu0 %v68
    %122 = vmatprep.subr.mxu0 0.0
    %123 = vmatpush2.msra.mxu0 0.0
    %124 = vmatprep.subr.mxu0 0.0
    %125 = vmatpush2.msra.mxu0 0.0
    %126 = vmatprep.subr.mxu0 0.0
    %127 = vmatpush2.msra.mxu0 0.0
    %128 = vmatprep.subr.mxu0 0.0
    %129 = vmatpush2.msra.mxu0 0.0
    %130 = vmatprep.subr.mxu0 0.0
    %131 = vmatpush2.msra.mxu0 0.0
    %132 = vmatprep.subr.mxu0 0.0
    %133 = vmatpush2.msra.mxu0 0.0
    %134 = vmatprep.subr.mxu0 0.0
    %135 = vmatpush2.msra.mxu0 0.0
    %136 = vmatprep.subr.mxu0 0.0
    %137 = vmatpush2.msra.mxu0 0.0
    %138 = vmatprep.subr.mxu0 0.0
    %139 = vmatpush2.msra.mxu0 0.0
    %140 = vmatprep.subr.mxu0 0.0
    %141 = vmatpush2.msra.mxu0 0.0
    %142 = vmatprep.subr.mxu0 0.0
    %143 = vmatpush2.msra.mxu0 0.0
    %144 = vmatprep.subr.mxu0 0.0
    %145 = vmatpush2.msra.mxu0 0.0
    %146 = vmatprep.subr.mxu0 0.0
    %147 = vmatpush2.msra.mxu0 0.0
    %148 = vmatprep.subr.mxu0 0.0
    %149 = vmatpush2.msra.mxu0 0.0
    %150 = vmatprep.subr.mxu0 0.0
    %151 = vmatpush2.msra.mxu0 0.0
    %152 = vmatprep.subr.mxu0 0.0
    %153 = vmatpush2.msra.mxu0 0.0
    %154 = vmatprep.mubr.f32.mxu0 0.0
    %155 = vmatmul.mubr.f32.gmra.mxu0 %v66
    %v156 = vpop.f32.mrf.mxu0
    %v157 = vadd.f32 %v88, %v156
    %v158 = vpop.f32.mrf.mxu0
    %159 = vdwg.mxu0
    %v160 = vld [vmem:[#allocation3] sm:$0xff]
    %162 = vset.pattern.permute.xlu0 0
    %163 = vperm.xlu0 %162, %v160
    %v164 = vpop.permute.xlu0 %163
    %166 = vmatprep.subr.mxu0 0.0
    %167 = vmatpush1.msra.mxu0 %v83
    %168 = vmatprep.subr.mxu0 0.0
    %169 = vmatpush1.msra.mxu0 %v82
    %170 = vmatprep.subr.mxu0 0.0
    %171 = vmatpush1.msra.mxu0 %v81
    %172 = vmatprep.subr.mxu0 0.0
    %173 = vmatpush1.msra.mxu0 %v80
    %174 = vmatprep.subr.mxu0 0.0
    %175 = vmatpush1.msra.mxu0 %v79
    %176 = vmatprep.subr.mxu0 0.0
    %177 = vmatpush1.msra.mxu0 %v78
    %178 = vmatprep.subr.mxu0 0.0
    %179 = vmatpush1.msra.mxu0 %v77
    %180 = vmatprep.subr.mxu0 0.0
    %181 = vmatpush1.msra.mxu0 %v76
    %182 = vmatprep.subr.mxu0 0.0
    %183 = vmatpush1.msra.mxu0 %v75
    %184 = vmatprep.subr.mxu0 0.0
    %185 = vmatpush1.msra.mxu0 %v74
    %186 = vmatprep.subr.mxu0 0.0
    %187 = vmatpush1.msra.mxu0 %v73
    %188 = vmatprep.subr.mxu0 0.0
    %189 = vmatpush1.msra.mxu0 %v72
    %190 = vmatprep.subr.mxu0 0.0
    %191 = vmatpush1.msra.mxu0 %v71
    %192 = vmatprep.subr.mxu0 0.0
    %193 = vmatpush1.msra.mxu0 %v70
    %194 = vmatprep.subr.mxu0 0.0
    %195 = vmatpush1.msra.mxu0 %v69
    %196 = vmatprep.subr.mxu0 0.0
    %197 = vmatpush1.msra.mxu0 %v68
    %198 = vmatprep.subr.mxu0 0.0
    %199 = vmatpush2.msra.mxu0 0.0
    %200 = vmatprep.subr.mxu0 0.0
    %201 = vmatpush2.msra.mxu0 0.0
    %202 = vmatprep.subr.mxu0 0.0
    %203 = vmatpush2.msra.mxu0 0.0
    %204 = vmatprep.subr.mxu0 0.0
    %205 = vmatpush2.msra.mxu0 0.0
    %206 = vmatprep.subr.mxu0 0.0
    %207 = vmatpush2.msra.mxu0 0.0
    %208 = vmatprep.subr.mxu0 0.0
    %209 = vmatpush2.msra.mxu0 0.0
    %210 = vmatprep.subr.mxu0 0.0
    %211 = vmatpush2.msra.mxu0 0.0
    %212 = vmatprep.subr.mxu0 0.0
    %213 = vmatpush2.msra.mxu0 0.0
    %214 = vmatprep.subr.mxu0 0.0
    %215 = vmatpush2.msra.mxu0 0.0
    %216 = vmatprep.subr.mxu0 0.0
    %217 = vmatpush2.msra.mxu0 0.0
    %218 = vmatprep.subr.mxu0 0.0
    %219 = vmatpush2.msra.mxu0 0.0
    %220 = vmatprep.subr.mxu0 0.0
    %221 = vmatpush2.msra.mxu0 0.0
    %222 = vmatprep.subr.mxu0 0.0
    %223 = vmatpush2.msra.mxu0 0.0
    %224 = vmatprep.subr.mxu0 0.0
    %225 = vmatpush2.msra.mxu0 0.0
    %226 = vmatprep.subr.mxu0 0.0
    %227 = vmatpush2.msra.mxu0 0.0
    %228 = vmatprep.subr.mxu0 0.0
    %229 = vmatpush2.msra.mxu0 0.0
    %230 = vmatprep.mubr.f32.mxu0 0.0
    %231 = vmatmul.mubr.f32.gmra.mxu0 %v67
    %v232 = vpop.f32.mrf.mxu0
    %v233 = vadd.f32 %v164, %v232
    %v234 = vpop.f32.mrf.mxu0
    %235 = vdwg.mxu0
    %237 = vrot.lane.b32.xlu0 %v157, 1
    %v238 = vpop.permute.xlu0 %237
    %vm240 = vcmask 7168
    %241 = vst.msk [vmem:[#allocation2] sm:$0xff] %vm240, %v238
    %243 = vrot.lane.b32.xlu0 %v233, 1
    %v244 = vpop.permute.xlu0 %243
    %246 = vst.msk [vmem:[#allocation3] sm:$0xff] %vm240, %v244
    %v247 = vld [vmem:[#allocation4] sm:$0xff]
    %v248 = vmul.f32 %v157, %v233
    %249 = vadd.xlane.f32.xlu0 %v248
    %v250 = vpop.xlane.xlu0 %249
    %v251 = vadd.f32 %v247, %v250
    %252 = vst.msk [vmem:[#allocation4] sm:$0xff] %vm240, %v251
    %v253 = vld [vmem:[#allocation5] sm:$0xff]
    %v254 = vmul.f32 %v157, %v157
    %255 = vadd.xlane.f32.xlu0 %v254
    %v256 = vpop.xlane.xlu0 %255
    %v257 = vadd.f32 %v253, %v256
    %258 = vst.msk [vmem:[#allocation5] sm:$0xff] %vm240, %v257
    %v259 = vld [vmem:[#allocation6] sm:$0xff]
    %v260 = vmul.f32 %v233, %v233
    %261 = vadd.xlane.f32.xlu0 %v260
    %v262 = vpop.xlane.xlu0 %261
    %v263 = vadd.f32 %v259, %v262
    %264 = vst.msk [vmem:[#allocation6] sm:$0xff] %vm240, %v263
    %v265 = vsub.f32 %v157, %v233
    %v266 = vld [vmem:[#allocation7] sm:$0xff]
    %v267 = vmul.f32 %v265, %v265
    %268 = vadd.xlane.f32.xlu0 %v267
    %v269 = vpop.xlane.xlu0 %268
    %v270 = vadd.f32 %v266, %v269
    %271 = vst.msk [vmem:[#allocation7] sm:$0xff] %vm240, %v270
    // Predicated region
    $region30: #{tpu_custom_call.1} parent=1 // pred_check
      %p272 = pneg %p55
    $region31: #{tpu_custom_call.1} parent=1 // pred_check_branch
      %274 = sbr.rel (%p272) target = $region33
    $region32: #{tpu_custom_call.1} parent=1 // pred_region
      %v275 = vld [vmem:[#allocation5] sm:$0xff]
      %v276 = vld [vmem:[#allocation6] sm:$0xff]
      %v277 = vmul.f32 %v275, %v276
      %v278 = vrsqrt.pop %v277
      %v279 = vmul.f32 %v277, %v278
      %vm280 = vcmp.eq.f32.partialorder %v277, inf
      %v281 = vsel %vm280, %v277, %v279
      %vm282 = vcmp.eq.f32.partialorder %v277, 0.0
      %v283 = vand.u32 %v277, 2147483648
      %v284 = vsel %vm282, %v283, %v281
      %v285 = vmax.f32 %v284, 1e-06
      %v286 = vld [vmem:[#allocation4] sm:$0xff]
      %v287 = vand.u32 2147483647, %v286
      %v288 = vrcp.pop %v285
      %v289 = vmul.f32 %v287, %v288
      %v290 = vld [vmem:[#allocation7] sm:$0xff]
      %v291 = vsel %vm240, %v289, 0.0
      %292 = vadd.xlane.f32.xlu0 %v291
      %v293 = vpop.xlane.xlu0 %292
      %v294 = vrot.slane %v293, 4
      %v295 = vadd.f32 %v293, %v294
      %v296 = vrot.slane %v295, 2
      %v297 = vadd.f32 %v295, %v296
      %v298 = vrot.slane %v297, 1
      %v299 = vadd.f32 %v297, %v298
      %s300 = vtos %v299
      %v301 = vstv %s300
      %v302 = vadd.f32 %v301, 0.0
      %303 = vst [vmem:[#allocation14] sm:$0xff] %v302
      %v304 = vsel %vm240, %v290, 0.0
      %305 = vadd.xlane.f32.xlu0 %v304
      %v306 = vpop.xlane.xlu0 %305
      %v307 = vrot.slane %v306, 4
      %v308 = vadd.f32 %v306, %v307
      %v309 = vrot.slane %v308, 2
      %v310 = vadd.f32 %v308, %v309
      %v311 = vrot.slane %v310, 1
      %v312 = vadd.f32 %v310, %v311
      %s313 = vtos %v312
      %v314 = vstv %s313
      %v315 = vadd.f32 %v314, 0.0
      %316 = vst [vmem:[#allocation15] sm:$0xff] %v315
    $region33: #{tpu_custom_call.1} parent=1 // pred_fallthru
      _
    // Predicated region
    $region34: #{tpu_custom_call.1} parent=1 // pred_check
      _
    $region35: #{tpu_custom_call.1} parent=1 // pred_check_branch
      %318 = sbr.rel (0) target = $region37
    $region36: #{tpu_custom_call.1} parent=1 // pred_region
      %s320 = ssub.s32 128, 128
      %321 = vsyncadd [#allocation10], %s320
      %s323 = sshll.u32 [#allocation14], 4
      %s324 = int_to_ptr.vmem [resolvable:$true] %s323
      %326 = dma.vmem_to_hbm [thread:$0]  %s324, 128, %s3, [#allocation10]
    $region37: #{tpu_custom_call.1} parent=1 // pred_fallthru
      _
    // Predicated region
    $region38: #{tpu_custom_call.1} parent=1 // pred_check
      _
    $region39: #{tpu_custom_call.1} parent=1 // pred_check_branch
      %328 = sbr.rel (0) target = $region41
    $region40: #{tpu_custom_call.1} parent=1 // pred_region
      %s330 = ssub.s32 128, 128
      %331 = vsyncadd [#allocation16], %s330
      %s333 = sshll.u32 [#allocation15], 4
      %s334 = int_to_ptr.vmem [resolvable:$true] %s333
      %336 = dma.vmem_to_hbm [thread:$0]  %s334, 128, %s4, [#allocation16]
    $region41: #{tpu_custom_call.1} parent=1 // pred_fallthru
      _
    // Predicated region
    $region42: #{tpu_custom_call.1} parent=1 // pred_check
      _
    $region43: #{tpu_custom_call.1} parent=1 // pred_check_branch
      %338 = sbr.rel (0) target = $region45
    $region44: #{tpu_custom_call.1} parent=1 // pred_region
      %339 = dma.done [#allocation10], 128
    $region45: #{tpu_custom_call.1} parent=1 // pred_fallthru
      _
    // Predicated region
    $region46: #{tpu_custom_call.1} parent=1 // pred_check
      _
    $region47: #{tpu_custom_call.1} parent=1 // pred_check_branch
      %341 = sbr.rel (0) target = $region49
    $region48: #{tpu_custom_call.1} parent=1 // pred_region
      %342 = dma.done [#allocation16], 128
    $region49: #{tpu_custom_call.1} parent=1 // pred_fallthru
      _
    %343 = vsyncpa [#allocation9], 1
    %344 = vsyncpa [#allocation12], 1
    %345 = vsyncpa [#allocation10], 1
    %346 = vsyncpa [#allocation16], 1

</llo_original>
